<compile_context>
chip_gen: v7x
topology: tpu7x:2x2x1
jax: 0.10.0
libtpu: 0.0.40
codegen_flags: <defaults>
</compile_context>

<pallas_src>
import jax
import jax.numpy as jnp
from jax.experimental import pallas as pl
from jax.experimental.pallas import tpu as pltpu

LATENT_DIM = 12
TIME_DIM = 20          # hard-coded "+ 20" in the PyTorch module
HIDDEN = 32
OUTPUT_DIM = 4

SELU_ALPHA = 1.6732632423543772
SELU_SCALE = 1.0507009873554805


def _classifier_kernel(z_ref, w1_ref, tproj_ref, w2_ref, b2_ref, o_ref):
    """Fused (z @ W1_blk + t_proj) -> SELU -> (@ W2_blk + b2) on one (tn, B*L) tile."""
    # (tn, B*L) @ (B*L, B*H) -> (tn, B*H): block-diagonal W1 gives per-batch h.
    h = jnp.dot(z_ref[...], w1_ref[...], preferred_element_type=jnp.float32)
    h = h + tproj_ref[...]                      # broadcast (1, B*H) over rows
    # SELU with the scale folded into W2: only the unscaled select remains here
    # (exp runs on the EUP slot, select on the VPU).
    a = jnp.where(h > 0, h, SELU_ALPHA * (jnp.exp(h) - 1.0))
    # (tn, B*H) @ (B*H, B*out) -> (tn, B*out): block-diagonal (pre-scaled) W2.
    o = jnp.dot(a, w2_ref[...], preferred_element_type=jnp.float32)
    o_ref[...] = (o + b2_ref[...]).astype(o_ref.dtype)


def _pick_row_tile(n, row_bytes, *, target_bytes=4 << 20, min_step_bytes=1 << 20):
    """Row tile sized in bytes (amortize ~0.35us per grid step); split so the
    grid has >= 2 steps (v7x megacore) whenever each step still moves >= 1 MiB."""
    tn = max(1, target_bytes // row_bytes)
    half = pl.cdiv(n, 2)
    if half * row_bytes >= min_step_bytes:
        tn = min(tn, half)
    tn = max(8, (tn // 8) * 8)                  # sublane-aligned block rows
    return n if tn >= n else tn


def classifier_forward(z, cmax_time, params):
    """Reproduces Classifier.forward.

    z:          (N, B, latent_dim) float32
    cmax_time:  (B, 20)            float32
    returns:    (N, B, output_dim) float32
    """
    w1, b1, w2, b2 = params
    n, b, latent = z.shape
    hidden = w1.shape[1]
    d_out = w2.shape[1]

    # --- wrapper-side prep (tiny, done once per call) -------------------------
    # Split W1: the cmax_time part collapses to a (B, H) tensor computed here,
    # so the kernel never materializes the concatenated (N, B, latent+20).
    w1_z = w1[:latent, :].astype(jnp.float32)                 # (latent, H)
    w1_t = w1[latent:, :].astype(jnp.float32)                 # (20, H)
    t_proj = cmax_time.astype(jnp.float32) @ w1_t + b1        # (B, H), includes b1

    # Batch block-diagonal replication -> dense, MXU-friendly matmul shapes.
    eye_b = jnp.eye(b, dtype=jnp.float32)
    w1_blk = jnp.kron(eye_b, w1_z)                            # (B*latent, B*H)
    w2_blk = SELU_SCALE * jnp.kron(eye_b, w2.astype(jnp.float32))  # (B*H, B*out)
    tproj_flat = t_proj.reshape(1, b * hidden)                # (1, B*H)
    b2_blk = jnp.tile(b2.reshape(1, d_out).astype(jnp.float32), (1, b))  # (1, B*out)

    # Lane-dense 2-D views (free contiguous reshapes of the HBM layout).
    z2 = z.reshape(n, b * latent).astype(jnp.float32)

    tn = _pick_row_tile(n, b * (latent + d_out) * 4)
    grid = (pl.cdiv(n, tn),)

    out2 = pl.pallas_call(
        _classifier_kernel,
        out_shape=jax.ShapeDtypeStruct((n, b * d_out), jnp.float32),
        grid_spec=pltpu.PrefetchScalarGridSpec(
            num_scalar_prefetch=0,
            grid=grid,
            in_specs=[
                pl.BlockSpec((tn, b * latent), lambda i: (i, 0)),          # z tile
                pl.BlockSpec((b * latent, b * hidden), lambda i: (0, 0)),  # W1_blk
                pl.BlockSpec((1, b * hidden), lambda i: (0, 0)),           # t_proj
                pl.BlockSpec((b * hidden, b * d_out), lambda i: (0, 0)),   # W2_blk
                pl.BlockSpec((1, b * d_out), lambda i: (0, 0)),            # b2
            ],
            out_specs=pl.BlockSpec((tn, b * d_out), lambda i: (i, 0)),
        ),
        compiler_params=pltpu.CompilerParams(
            dimension_semantics=("parallel",)),
    )(z2, w1_blk, tproj_flat, w2_blk, b2_blk)

    return out2.reshape(n, b, d_out)


def init_params(key, latent_dim, output_dim, std=0.001):
    """Matches utils.init_network_weights: normal(0, std) weights, zero bias."""
    k1, k2 = jax.random.split(key)
    d_in = latent_dim + TIME_DIM
    w1 = std * jax.random.normal(k1, (d_in, HIDDEN), dtype=jnp.float32)
    b1 = jnp.zeros((1, HIDDEN), dtype=jnp.float32)
    w2 = std * jax.random.normal(k2, (HIDDEN, output_dim), dtype=jnp.float32)
    b2 = jnp.zeros((1, output_dim), dtype=jnp.float32)
    return w1, b1, w2, b2


if __name__ == "__main__":
    key = jax.random.PRNGKey(0)
    k_z, k_t, k_p = jax.random.split(key, 3)

    N, B = 3, 8                                  # traj samples, batch
    z = jax.random.normal(k_z, (N, B, LATENT_DIM), dtype=jnp.float32)
    cmax_time = jax.random.normal(k_t, (B, TIME_DIM), dtype=jnp.float32)
    # Module default init is std=0.001; use a larger std here so the numeric
    # check actually exercises SELU's negative branch at a meaningful scale.
    params = init_params(k_p, LATENT_DIM, OUTPUT_DIM, std=0.02)

    out = jax.block_until_ready(classifier_forward(z, cmax_time, params))

    # plain-JAX reference using the original concat formulation
    x_ref = jnp.concatenate(
        [z, jnp.broadcast_to(cmax_time[None], (N, B, TIME_DIM))], axis=2)
    h_ref = x_ref @ params[0] + params[1]
    h_ref = SELU_SCALE * jnp.where(h_ref > 0, h_ref,
                                   SELU_ALPHA * (jnp.exp(h_ref) - 1.0))
    ref = h_ref @ params[2] + params[3]

    assert out.shape == (N, B, OUTPUT_DIM)
    assert jnp.allclose(out, ref, atol=1e-6, rtol=1e-5), \
        float(jnp.max(jnp.abs(out - ref)))

    print("KERNEL_OK")
</pallas_src>

<mosaic_0001>
module attributes {stable_mosaic.version = 11 : i64} {
  func.func @_classifier_kernel(%arg0: i32, %arg1: memref<3x96xf32, #tpu.memory_space<vmem>>, %arg2: memref<96x256xf32, #tpu.memory_space<vmem>>, %arg3: memref<1x256xf32, #tpu.memory_space<vmem>>, %arg4: memref<256x32xf32, #tpu.memory_space<vmem>>, %arg5: memref<1x32xf32, #tpu.memory_space<vmem>>, %arg6: memref<3x32xf32, #tpu.memory_space<vmem>>) attributes {dimension_semantics = [#tpu.dimension_semantics<parallel>], iteration_bounds = array<i64: 1>, scalar_prefetch = 0 : i64, scratch_operands = 0 : i64, tpu.core_type = #tpu.core_type<tc>, window_params = [{transform_indices = @transform_0, window_bounds = array<i64: 3, 96>}, {pipeline_mode = #tpu.pipeline_mode<synchronous>, transform_indices = @transform_1, window_bounds = array<i64: 96, 256>}, {pipeline_mode = #tpu.pipeline_mode<synchronous>, transform_indices = @transform_2, window_bounds = array<i64: 1, 256>}, {pipeline_mode = #tpu.pipeline_mode<synchronous>, transform_indices = @transform_3, window_bounds = array<i64: 256, 32>}, {pipeline_mode = #tpu.pipeline_mode<synchronous>, transform_indices = @transform_4, window_bounds = array<i64: 1, 32>}, {transform_indices = @transform_5, window_bounds = array<i64: 3, 32>}]} {
    %c0 = arith.constant 0 : index
    %c0_0 = arith.constant 0 : index
    %0 = vector.load %arg1[%c0, %c0_0] : memref<3x96xf32, #tpu.memory_space<vmem>>, vector<3x96xf32>
    %c0_1 = arith.constant 0 : index
    %c0_2 = arith.constant 0 : index
    %1 = vector.load %arg2[%c0_1, %c0_2] : memref<96x256xf32, #tpu.memory_space<vmem>>, vector<96x256xf32>
    %cst = arith.constant dense<0.000000e+00> : vector<3x256xf32>
    %2 = tpu.matmul %0, %1, %cst {dimension_numbers = #tpu.dot_dimension_numbers<[1], [0], [0], [1], [0, 0, 1, 1], [], []>} : vector<3x96xf32>, vector<96x256xf32>, vector<3x256xf32> -> vector<3x256xf32>
    %c0_3 = arith.constant 0 : index
    %c0_4 = arith.constant 0 : index
    %3 = vector.load %arg3[%c0_3, %c0_4] : memref<1x256xf32, #tpu.memory_space<vmem>>, vector<1x256xf32>
    %4 = vector.broadcast %3 : vector<1x256xf32> to vector<3x256xf32>
    %5 = arith.addf %2, %4 : vector<3x256xf32>
    %cst_5 = arith.constant 0.000000e+00 : f32
    %6 = vector.broadcast %cst_5 : f32 to vector<3x256xf32>
    %7 = arith.cmpf ogt, %5, %6 : vector<3x256xf32>
    %8 = math.exp %5 : vector<3x256xf32>
    %cst_6 = arith.constant 1.000000e+00 : f32
    %9 = vector.broadcast %cst_6 : f32 to vector<3x256xf32>
    %10 = arith.subf %8, %9 : vector<3x256xf32>
    %cst_7 = arith.constant 1.67326319 : f32
    %11 = vector.broadcast %cst_7 : f32 to vector<3x256xf32>
    %12 = arith.mulf %11, %10 : vector<3x256xf32>
    %13 = arith.select %7, %5, %12 : vector<3x256xi1>, vector<3x256xf32>
    %c0_8 = arith.constant 0 : index
    %c0_9 = arith.constant 0 : index
    %14 = vector.load %arg4[%c0_8, %c0_9] : memref<256x32xf32, #tpu.memory_space<vmem>>, vector<256x32xf32>
    %cst_10 = arith.constant dense<0.000000e+00> : vector<3x32xf32>
    %15 = tpu.matmul %13, %14, %cst_10 {dimension_numbers = #tpu.dot_dimension_numbers<[1], [0], [0], [1], [0, 0, 1, 1], [], []>} : vector<3x256xf32>, vector<256x32xf32>, vector<3x32xf32> -> vector<3x32xf32>
    %c0_11 = arith.constant 0 : index
    %c0_12 = arith.constant 0 : index
    %16 = vector.load %arg5[%c0_11, %c0_12] : memref<1x32xf32, #tpu.memory_space<vmem>>, vector<1x32xf32>
    %17 = vector.broadcast %16 : vector<1x32xf32> to vector<3x32xf32>
    %18 = arith.addf %15, %17 : vector<3x32xf32>
    %c0_13 = arith.constant 0 : index
    %c0_14 = arith.constant 0 : index
    %19 = vector.load %arg6[%c0_13, %c0_14] : memref<3x32xf32, #tpu.memory_space<vmem>>, vector<3x32xf32>
    tpu.vector_store %arg6[%c0_13, %c0_14], %18 {strides = array<i32>} : memref<3x32xf32, #tpu.memory_space<vmem>>, vector<3x32xf32>,
    return
  }
  func.func @transform_0(%arg0: i32) -> (i32, i32) {
    %c0_i32 = arith.constant 0 : i32
    %c0_i32_0 = arith.constant 0 : i32
    return %arg0, %c0_i32 : i32, i32
  }
  func.func @transform_1(%arg0: i32) -> (i32, i32) {
    %c0_i32 = arith.constant 0 : i32
    %c0_i32_0 = arith.constant 0 : i32
    %c0_i32_1 = arith.constant 0 : i32
    return %c0_i32, %c0_i32_0 : i32, i32
  }
  func.func @transform_2(%arg0: i32) -> (i32, i32) {
    %c0_i32 = arith.constant 0 : i32
    %c0_i32_0 = arith.constant 0 : i32
    %c0_i32_1 = arith.constant 0 : i32
    return %c0_i32, %c0_i32_0 : i32, i32
  }
  func.func @transform_3(%arg0: i32) -> (i32, i32) {
    %c0_i32 = arith.constant 0 : i32
    %c0_i32_0 = arith.constant 0 : i32
    %c0_i32_1 = arith.constant 0 : i32
    return %c0_i32, %c0_i32_0 : i32, i32
  }
  func.func @transform_4(%arg0: i32) -> (i32, i32) {
    %c0_i32 = arith.constant 0 : i32
    %c0_i32_0 = arith.constant 0 : i32
    %c0_i32_1 = arith.constant 0 : i32
    return %c0_i32, %c0_i32_0 : i32, i32
  }
  func.func @transform_5(%arg0: i32) -> (i32, i32) {
    %c0_i32 = arith.constant 0 : i32
    %c0_i32_0 = arith.constant 0 : i32
    return %arg0, %c0_i32 : i32, i32
  }
}

</mosaic_0001>

<llo_original>
// kernel: tpu_custom_call.1
$region0: #{tpu_custom_call.1}
  #allocation0 [shape = 'u32[]', space=smem, size = 0x4, offset = 0x4, fixed_abs, tag = 'smem constant byte address 0x4 - core index']
  #allocation1 [shape = 'u32[144,128]{1,0:T(1,128)}', space=vmem, size = 0x12000, scoped, tag = 'internal scratch']
  %s0 = inlined_call_operand.vmem [shape: f32[3,96], index: 0, kind: input, shape index: {}]
  %s1 = inlined_call_operand.vmem [shape: f32[96,256], index: 1, kind: input, shape index: {}]
  %s2 = inlined_call_operand.vmem [shape: f32[1,256], index: 2, kind: input, shape index: {}]
  %s3 = inlined_call_operand.vmem [shape: f32[256,32], index: 3, kind: input, shape index: {}]
  %s4 = inlined_call_operand.vmem [shape: f32[1,32], index: 4, kind: input, shape index: {}]
  %s5 = inlined_call_operand.hbm [shape: f32[3,32], index: 5, kind: output, shape index: {}]
  %s6 = sld [smem:[#allocation0]]
  $region30: #{tpu_custom_call.1} parent=0
    _
  %s8 = ssub.s32 1, %s6
  %s9 = scalar_select 0, %s8, %s6
  $region1: #{tpu_custom_call.1} parent=0
    #allocation2 [shape = 'u8[2048]{0}', space=vmem, size = 0x800, scoped, tag = 'output window, operand 0, single buffered']
    #allocation3 [shape = 's32[1]{0}', space=sflag, size = 0x4, scoped, tag = 'scoped memory for tpu_custom_call.1']
    %10 = vsyncpa [#allocation3], 0
    // Predicated region
    $region2: #{tpu_custom_call.1} parent=1 // pred_check
      _
    $region3: #{tpu_custom_call.1} parent=1 // pred_check_branch
      %12 = sbr.rel (0) target = $region5
    $region4: #{tpu_custom_call.1} parent=1 // pred_region
      _
    $region5: #{tpu_custom_call.1} parent=1 // pred_fallthru
      _
    // Predicated region
    $region6: #{tpu_custom_call.1} parent=1 // pred_check
      _
    $region7: #{tpu_custom_call.1} parent=1 // pred_check_branch
      %14 = sbr.rel (0) target = $region9
    $region8: #{tpu_custom_call.1} parent=1 // pred_region
      _
    $region9: #{tpu_custom_call.1} parent=1 // pred_fallthru
      _
    // Predicated region
    $region10: #{tpu_custom_call.1} parent=1 // pred_check
      _
    $region11: #{tpu_custom_call.1} parent=1 // pred_check_branch
      %16 = sbr.rel (0) target = $region13
    $region12: #{tpu_custom_call.1} parent=1 // pred_region
      _
    $region13: #{tpu_custom_call.1} parent=1 // pred_fallthru
      _
    // Predicated region
    $region14: #{tpu_custom_call.1} parent=1 // pred_check
      _
    $region15: #{tpu_custom_call.1} parent=1 // pred_check_branch
      %18 = sbr.rel (0) target = $region17
    $region16: #{tpu_custom_call.1} parent=1 // pred_region
      _
    $region17: #{tpu_custom_call.1} parent=1 // pred_fallthru
      _
    // Predicated region
    $region18: #{tpu_custom_call.1} parent=1 // pred_check
      _
    $region19: #{tpu_custom_call.1} parent=1 // pred_check_branch
      %20 = sbr.rel (0) target = $region21
    $region20: #{tpu_custom_call.1} parent=1 // pred_region
      _
    $region21: #{tpu_custom_call.1} parent=1 // pred_fallthru
      _
    %v21 = vld [vmem:[%s0] sm:$0x7]
    %v22 = vld [vmem:[%s1] sm:$0xff]
    %v23 = vld [vmem:[%s1 + $0x8] sm:$0xff]
    %v24 = vld [vmem:[%s1 + $0x10] sm:$0xff]
    %v25 = vld [vmem:[%s1 + $0x18] sm:$0xff]
    %v26 = vld [vmem:[%s1 + $0x20] sm:$0xff]
    %v27 = vld [vmem:[%s1 + $0x28] sm:$0xff]
    %v28 = vld [vmem:[%s1 + $0x30] sm:$0xff]
    %v29 = vld [vmem:[%s1 + $0x38] sm:$0xff]
    %v30 = vld [vmem:[%s1 + $0x40] sm:$0xff]
    %v31 = vld [vmem:[%s1 + $0x48] sm:$0xff]
    %v32 = vld [vmem:[%s1 + $0x50] sm:$0xff]
    %v33 = vld [vmem:[%s1 + $0x58] sm:$0xff]
    %v34 = vld [vmem:[%s1 + $0x60] sm:$0xff]
    %v35 = vld [vmem:[%s1 + $0x68] sm:$0xff]
    %v36 = vld [vmem:[%s1 + $0x70] sm:$0xff]
    %v37 = vld [vmem:[%s1 + $0x78] sm:$0xff]
    %v38 = vld [vmem:[%s1 + $0x80] sm:$0xff]
    %v39 = vld [vmem:[%s1 + $0x88] sm:$0xff]
    %v40 = vld [vmem:[%s1 + $0x90] sm:$0xff]
    %v41 = vld [vmem:[%s1 + $0x98] sm:$0xff]
    %v42 = vld [vmem:[%s1 + $0xa0] sm:$0xff]
    %v43 = vld [vmem:[%s1 + $0xa8] sm:$0xff]
    %v44 = vld [vmem:[%s1 + $0xb0] sm:$0xff]
    %v45 = vld [vmem:[%s1 + $0xb8] sm:$0xff]
    %v46 = vld [vmem:[%s2] sm:$0x3]
    %v48 = vlaneseq
    %v49 = vshrl.u32 %v48, 7
    %v50 = vsub.s32 0, %v49
    %v51 = vrot.slane %v46, %v50
    %v52 = vlaneseq
    %v53 = vshrl.u32 %v52, 7
    %v54 = vsub.s32 1, %v53
    %v55 = vrot.slane %v46, %v54
    %vm58 = vcmask 785408
    %v60 = vsel %vm58, %v21, 0
    %62 = vmatprep.subr.mxu0 %v23
    %63 = vmatpush1.msra.mxu0 %v22
    %64 = vmatprep.subr.mxu0 %v25
    %65 = vmatpush1.msra.mxu0 %v24
    %66 = vmatprep.subr.mxu0 %v27
    %67 = vmatpush1.msra.mxu0 %v26
    %68 = vmatprep.subr.mxu0 %v29
    %69 = vmatpush1.msra.mxu0 %v28
    %70 = vmatprep.subr.mxu0 %v31
    %71 = vmatpush1.msra.mxu0 %v30
    %72 = vmatprep.subr.mxu0 %v33
    %73 = vmatpush1.msra.mxu0 %v32
    %74 = vmatprep.subr.mxu0 %v35
    %75 = vmatpush1.msra.mxu0 %v34
    %76 = vmatprep.subr.mxu0 %v37
    %77 = vmatpush1.msra.mxu0 %v36
    %78 = vmatprep.subr.mxu0 %v39
    %79 = vmatpush1.msra.mxu0 %v38
    %80 = vmatprep.subr.mxu0 %v41
    %81 = vmatpush1.msra.mxu0 %v40
    %82 = vmatprep.subr.mxu0 %v43
    %83 = vmatpush1.msra.mxu0 %v42
    %84 = vmatprep.subr.mxu0 %v45
    %85 = vmatpush1.msra.mxu0 %v44
    %86 = vmatprep.subr.mxu0 0.0
    %87 = vmatpush1.msra.mxu0 0.0
    %88 = vmatprep.subr.mxu0 0.0
    %89 = vmatpush1.msra.mxu0 0.0
    %90 = vmatprep.subr.mxu0 0.0
    %91 = vmatpush1.msra.mxu0 0.0
    %92 = vmatprep.subr.mxu0 0.0
    %93 = vmatpush1.msra.mxu0 0.0
    %94 = vmatprep.subr.mxu0 0.0
    %95 = vmatpush1.msra.mxu0 0.0
    %96 = vmatprep.subr.mxu0 0.0
    %97 = vmatpush1.msra.mxu0 0.0
    %98 = vmatprep.subr.mxu0 0.0
    %99 = vmatpush1.msra.mxu0 0.0
    %100 = vmatprep.subr.mxu0 0.0
    %101 = vmatpush1.msra.mxu0 0.0
    %102 = vmatprep.subr.mxu0 0.0
    %103 = vmatpush1.msra.mxu0 0.0
    %104 = vmatprep.subr.mxu0 0.0
    %105 = vmatpush1.msra.mxu0 0.0
    %106 = vmatprep.subr.mxu0 0.0
    %107 = vmatpush1.msra.mxu0 0.0
    %108 = vmatprep.subr.mxu0 0.0
    %109 = vmatpush1.msra.mxu0 0.0
    %110 = vmatprep.subr.mxu0 0.0
    %111 = vmatpush1.msra.mxu0 0.0
    %112 = vmatprep.subr.mxu0 0.0
    %113 = vmatpush1.msra.mxu0 0.0
    %114 = vmatprep.subr.mxu0 0.0
    %115 = vmatpush1.msra.mxu0 0.0
    %116 = vmatprep.subr.mxu0 0.0
    %117 = vmatpush1.msra.mxu0 0.0
    %118 = vmatprep.subr.mxu0 0.0
    %119 = vmatpush1.msra.mxu0 0.0
    %120 = vmatprep.subr.mxu0 0.0
    %121 = vmatpush1.msra.mxu0 0.0
    %122 = vmatprep.subr.mxu0 0.0
    %123 = vmatpush1.msra.mxu0 0.0
    %124 = vmatprep.subr.mxu0 0.0
    %125 = vmatpush1.msra.mxu0 0.0
    %126 = vmatprep.mubr.f32.mxu0 0.0
    %127 = vmatmul.mubr.f32.gmra.mrb[0].mxu0 %v60
    %v128 = vpop.f32.mrb[0].mxu0
    %v129 = vadd.f32 %v51, %v128
    %v130 = vpop.f32.mrb[0].mxu0
    %v131 = vadd.f32 %v55, %v130
    %132 = vdwg.mxu0
    %vm133 = vcmp.gt.f32.partialorder %v129, 0.0
    %vm134 = vcmp.gt.f32.partialorder %v131, 0.0
    %v135 = vmul.f32 %v129, 1.442695
    %v136 = vpow.pop %v135
    %v137 = vmul.f32 %v131, 1.442695
    %v138 = vpow.pop %v137
    %v139 = vsub.f32 %v136, 1.0
    %v140 = vsub.f32 %v138, 1.0
    %v141 = vmul.f32 %v139, 1.6732632
    %v142 = vmul.f32 %v140, 1.6732632
    %v143 = vsel %vm133, %v129, %v141
    %v144 = vsel %vm134, %v131, %v142
    %v145 = vld [vmem:[%s3] sm:$0xff]
    %v146 = vld [vmem:[%s3 + $0x8] sm:$0xff]
    %v147 = vld [vmem:[%s3 + $0x10] sm:$0xff]
    %v148 = vld [vmem:[%s3 + $0x18] sm:$0xff]
    %v149 = vld [vmem:[%s3 + $0x20] sm:$0xff]
    %v150 = vld [vmem:[%s3 + $0x28] sm:$0xff]
    %v151 = vld [vmem:[%s3 + $0x30] sm:$0xff]
    %v152 = vld [vmem:[%s3 + $0x38] sm:$0xff]
    %v153 = vld [vmem:[%s3 + $0x40] sm:$0xff]
    %v154 = vld [vmem:[%s3 + $0x48] sm:$0xff]
    %v155 = vld [vmem:[%s3 + $0x50] sm:$0xff]
    %v156 = vld [vmem:[%s3 + $0x58] sm:$0xff]
    %v157 = vld [vmem:[%s3 + $0x60] sm:$0xff]
    %v158 = vld [vmem:[%s3 + $0x68] sm:$0xff]
    %v159 = vld [vmem:[%s3 + $0x70] sm:$0xff]
    %v160 = vld [vmem:[%s3 + $0x78] sm:$0xff]
    %v161 = vld [vmem:[%s3 + $0x80] sm:$0xff]
    %v162 = vld [vmem:[%s3 + $0x88] sm:$0xff]
    %v163 = vld [vmem:[%s3 + $0x90] sm:$0xff]
    %v164 = vld [vmem:[%s3 + $0x98] sm:$0xff]
    %v165 = vld [vmem:[%s3 + $0xa0] sm:$0xff]
    %v166 = vld [vmem:[%s3 + $0xa8] sm:$0xff]
    %v167 = vld [vmem:[%s3 + $0xb0] sm:$0xff]
    %v168 = vld [vmem:[%s3 + $0xb8] sm:$0xff]
    %v169 = vld [vmem:[%s3 + $0xc0] sm:$0xff]
    %v170 = vld [vmem:[%s3 + $0xc8] sm:$0xff]
    %v171 = vld [vmem:[%s3 + $0xd0] sm:$0xff]
    %v172 = vld [vmem:[%s3 + $0xd8] sm:$0xff]
    %v173 = vld [vmem:[%s3 + $0xe0] sm:$0xff]
    %v174 = vld [vmem:[%s3 + $0xe8] sm:$0xff]
    %v175 = vld [vmem:[%s3 + $0xf0] sm:$0xff]
    %v176 = vld [vmem:[%s3 + $0xf8] sm:$0xff]
    %v177 = vld [vmem:[%s4] sm:$0x1]
    %v179 = vlaneseq
    %v180 = vshrl.u32 %v179, 7
    %v181 = vsub.s32 0, %v180
    %v182 = vrot.slane %v177, %v181
    %184 = vmatprep.subr.mxu0 0.0
    %185 = vmatpush1.msra.mxu0 %v145
    %186 = vmatprep.subr.mxu0 0.0
    %187 = vmatpush1.msra.mxu0 %v146
    %188 = vmatprep.subr.mxu0 0.0
    %189 = vmatpush1.msra.mxu0 %v147
    %190 = vmatprep.subr.mxu0 0.0
    %191 = vmatpush1.msra.mxu0 %v148
    %192 = vmatprep.subr.mxu0 0.0
    %193 = vmatpush1.msra.mxu0 %v149
    %194 = vmatprep.subr.mxu0 0.0
    %195 = vmatpush1.msra.mxu0 %v150
    %196 = vmatprep.subr.mxu0 0.0
    %197 = vmatpush1.msra.mxu0 %v151
    %198 = vmatprep.subr.mxu0 0.0
    %199 = vmatpush1.msra.mxu0 %v152
    %200 = vmatprep.subr.mxu0 0.0
    %201 = vmatpush1.msra.mxu0 %v153
    %202 = vmatprep.subr.mxu0 0.0
    %203 = vmatpush1.msra.mxu0 %v154
    %204 = vmatprep.subr.mxu0 0.0
    %205 = vmatpush1.msra.mxu0 %v155
    %206 = vmatprep.subr.mxu0 0.0
    %207 = vmatpush1.msra.mxu0 %v156
    %208 = vmatprep.subr.mxu0 0.0
    %209 = vmatpush1.msra.mxu0 %v157
    %210 = vmatprep.subr.mxu0 0.0
    %211 = vmatpush1.msra.mxu0 %v158
    %212 = vmatprep.subr.mxu0 0.0
    %213 = vmatpush1.msra.mxu0 %v159
    %214 = vmatprep.subr.mxu0 0.0
    %215 = vmatpush1.msra.mxu0 %v160
    %216 = vmatprep.subr.mxu0 0.0
    %217 = vmatpush1.msra.mxu0 %v161
    %218 = vmatprep.subr.mxu0 0.0
    %219 = vmatpush1.msra.mxu0 %v162
    %220 = vmatprep.subr.mxu0 0.0
    %221 = vmatpush1.msra.mxu0 %v163
    %222 = vmatprep.subr.mxu0 0.0
    %223 = vmatpush1.msra.mxu0 %v164
    %224 = vmatprep.subr.mxu0 0.0
    %225 = vmatpush1.msra.mxu0 %v165
    %226 = vmatprep.subr.mxu0 0.0
    %227 = vmatpush1.msra.mxu0 %v166
    %228 = vmatprep.subr.mxu0 0.0
    %229 = vmatpush1.msra.mxu0 %v167
    %230 = vmatprep.subr.mxu0 0.0
    %231 = vmatpush1.msra.mxu0 %v168
    %232 = vmatprep.subr.mxu0 0.0
    %233 = vmatpush1.msra.mxu0 %v169
    %234 = vmatprep.subr.mxu0 0.0
    %235 = vmatpush1.msra.mxu0 %v170
    %236 = vmatprep.subr.mxu0 0.0
    %237 = vmatpush1.msra.mxu0 %v171
    %238 = vmatprep.subr.mxu0 0.0
    %239 = vmatpush1.msra.mxu0 %v172
    %240 = vmatprep.subr.mxu0 0.0
    %241 = vmatpush1.msra.mxu0 %v173
    %242 = vmatprep.subr.mxu0 0.0
    %243 = vmatpush1.msra.mxu0 %v174
    %244 = vmatprep.subr.mxu0 0.0
    %245 = vmatpush1.msra.mxu0 %v175
    %246 = vmatprep.subr.mxu0 0.0
    %247 = vmatpush1.msra.mxu0 %v176
    %248 = vmatprep.mubr.f32.mxu0 %v144
    %249 = vmatmul.mubr.f32.gmra.mrb[0].mxu0 %v143
    %v250 = vpop.f32.mrb[0].mxu0
    %v251 = vadd.f32 %v182, %v250
    %v252 = vpop.f32.mrb[0].mxu0
    %253 = vdwg.mxu0
    %vm254 = vcmask 256000
    %255 = vst.msk [vmem:[#allocation2] sm:$0x7] %vm254, %v251
    // Predicated region
    $region22: #{tpu_custom_call.1} parent=1 // pred_check
      _
    $region23: #{tpu_custom_call.1} parent=1 // pred_check_branch
      %257 = sbr.rel (0) target = $region25
    $region24: #{tpu_custom_call.1} parent=1 // pred_region
      %s259 = ssub.s32 64, 64
      %260 = vsyncadd [#allocation3], %s259
      %s262 = sshll.u32 [#allocation2], 4
      %s263 = int_to_ptr.vmem [resolvable:$true] %s262
      %265 = dma.vmem_to_hbm [thread:$0]  %s263, 64, %s5, [#allocation3]
    $region25: #{tpu_custom_call.1} parent=1 // pred_fallthru
      _
    // Predicated region
    $region26: #{tpu_custom_call.1} parent=1 // pred_check
      _
    $region27: #{tpu_custom_call.1} parent=1 // pred_check_branch
      %267 = sbr.rel (0) target = $region29
    $region28: #{tpu_custom_call.1} parent=1 // pred_region
      %268 = dma.done [#allocation3], 64
    $region29: #{tpu_custom_call.1} parent=1 // pred_fallthru
      _
    %269 = vsyncpa [#allocation3], 1

</llo_original>
